<compile_context>
chip_gen: v7x
topology: tpu7x:2x2x1
jax: 0.10.0
libtpu: 0.0.40
codegen_flags: <defaults>
</compile_context>

<pallas_src>
import functools

import jax
import jax.numpy as jnp
from jax.experimental import pallas as pl
from jax.experimental.pallas import tpu as pltpu


def _round_up(n: int, m: int) -> int:
    return ((n + m - 1) // m) * m


def make_value_net_kernel(num_hidden: int):
    """Kernel over one batch tile (feature-major layout).

    refs = (xT, wT_1, b_1, ..., wT_H, b_H, w_head, b_head, out)
      xT      : (D0p, TB)   bf16   input tile, batch on lanes
      wT_l    : (Dlp, D_{l-1}p) bf16   transposed hidden weight (VMEM resident)
      b_l     : (Dlp, 1)    f32    hidden bias column
      w_head  : (DHp, 1)    f32    value-head weight column
      b_head  : (1, 1)      f32    value-head bias
      out     : (1, TB)     f32    lane-dense value row for this tile
    """

    def kernel(*refs):
        x_ref = refs[0]
        out_ref = refs[-1]
        wb = refs[1:-1]

        h_bf16 = x_ref[...]                          # (D0p, TB) bf16
        h_f32 = h_bf16.astype(jnp.float32)           # only used if num_hidden == 0

        for l in range(num_hidden):
            w = wb[2 * l][...]                       # (Dlp, D_{l-1}p) bf16
            b = wb[2 * l + 1][...]                   # (Dlp, 1) f32
            # MXU matmul in bf16 with f32 accumulation; bias-add / ReLU stay in f32
            # (safe on v5e which has no bf16 VPU path).
            h_f32 = jnp.maximum(
                jnp.dot(w, h_bf16, preferred_element_type=jnp.float32) + b, 0.0)
            h_bf16 = h_f32.astype(jnp.bfloat16)      # narrow the live intermediate

        # Value head (hidden -> 1) fully in f32: per-lane multiply + sublane reduce.
        w_head = wb[2 * num_hidden][...]             # (DHp, 1) f32
        b_head = wb[2 * num_hidden + 1][...]         # (1, 1)  f32
        out_ref[...] = jnp.sum(h_f32 * w_head, axis=0, keepdims=True) + b_head

    return kernel


def prepare_value_net_params(params):
    """One-time parameter prep (do NOT call per forward): transpose to feature-major,
    zero-pad feature dims to sublane multiples of 8, cast hidden layers to bf16.

    params: list of (W, b) with W (in, out) f32, b (1, out) f32; last layer has out == 1.
    Returns a flat tuple (wT_1, b_1, ..., wT_H, b_H, w_head, b_head).
    """
    num_hidden = len(params) - 1
    dims = [params[0][0].shape[0]] + [w.shape[1] for (w, _) in params]
    pdims = [_round_up(d, 8) for d in dims[:-1]] + [dims[-1]]   # head width stays 1

    prepped = []
    for l in range(num_hidden):
        w, b = params[l]
        wt = jnp.zeros((pdims[l + 1], pdims[l]), jnp.bfloat16)
        wt = wt.at[: w.shape[1], : w.shape[0]].set(w.T.astype(jnp.bfloat16))
        bt = jnp.zeros((pdims[l + 1], 1), jnp.float32)
        bt = bt.at[: b.shape[1], 0].set(b.reshape(-1).astype(jnp.float32))
        prepped += [wt, bt]

    w, b = params[-1]                                    # (H, 1), (1, 1)
    wh = jnp.zeros((pdims[-2], 1), jnp.float32).at[: w.shape[0], :].set(
        w.astype(jnp.float32))
    bh = jnp.asarray(b, jnp.float32).reshape(1, 1)
    prepped += [wh, bh]
    return tuple(prepped)


@functools.partial(jax.jit, static_argnames=("tb",))
def value_net_forward(x, prepped, *, tb: int = 512):
    """x: (B, input_dim) f32; prepped: output of prepare_value_net_params.

    Returns (B, 1) f32 value estimates (same semantics as the PyTorch ValueNet forward).
    """
    B, in_dim = x.shape
    num_hidden = (len(prepped) - 2) // 2
    d0p = prepped[0].shape[1] if num_hidden > 0 else prepped[-2].shape[0]

    # Batch tile on the lane axis: multiple of 128, clamped to the padded batch.
    tb = max(128, _round_up(tb, 128))
    bp_min = _round_up(B, 128)
    tb_eff = min(tb, bp_min)
    # Prefer >= 2 tiles when the batch allows it so both v7x TensorCores get work
    # (extra grid steps are ~0.35us each -> harmless on single-TC v5e/v6e).
    if bp_min // tb_eff < 2 and bp_min >= 256:
        tb_eff = _round_up(bp_min // 2, 128)
    num_tiles = pl.cdiv(B, tb_eff)
    Bp = num_tiles * tb_eff

    # The one wrapper-side copy: transpose + cast to bf16 + pad (fused by XLA).  This is what
    # buys the lane-dense layout; feature padding is at most 7 rows, batch padding only the tail.
    x_t = x.T.astype(jnp.bfloat16)                       # (in_dim, B)
    if (d0p != in_dim) or (Bp != B):
        x_t = jnp.pad(x_t, ((0, d0p - in_dim), (0, Bp - B)))

    # x streamed per batch tile; weights/biases VMEM-resident via constant index_maps.
    in_specs = [pl.BlockSpec((d0p, tb_eff), lambda i: (0, i))]
    for p in prepped:
        in_specs.append(pl.BlockSpec(p.shape, lambda i: (0, 0)))

    out = pl.pallas_call(
        make_value_net_kernel(num_hidden),
        out_shape=jax.ShapeDtypeStruct((1, Bp), jnp.float32),
        grid=(num_tiles,),
        in_specs=in_specs,
        out_specs=pl.BlockSpec((1, tb_eff), lambda i: (0, i)),
        compiler_params=pltpu.CompilerParams(
            # Batch tiles are independent -> shard across TensorCores where available.
            dimension_semantics=("parallel",),
            # Explicit scoped-VMEM budget: well above this kernel's ~1 MiB footprint,
            # well below v7x's 64 MiB physical ceiling.
            vmem_limit_bytes=32 * 1024 * 1024,
        ),
    )(x_t, *prepped)

    # Lane-dense (1, Bp) row -> true (B, 1) value column.
    return out[0, :B].reshape(B, 1)


def init_value_net_params(key, input_dim, hidden_dims):
    """Deterministic init matching PyTorch nn.Linear shapes (stored as (in, out) for x @ W)."""
    params = []
    dims = [input_dim] + list(hidden_dims) + [1]   # ValueNet head: output_dim = 1
    for i in range(len(dims) - 1):
        key, kw, kb = jax.random.split(key, 3)
        fan_in, fan_out = dims[i], dims[i + 1]
        bound = 1.0 / jnp.sqrt(fan_in)
        w = jax.random.uniform(kw, (fan_in, fan_out), jnp.float32, -bound, bound)
        b = jax.random.uniform(kb, (1, fan_out), jnp.float32, -bound, bound)
        params.append((w, b))
    return params


if __name__ == "__main__":
    # Small shapes implied by the module: state (batch, input_dim) -> value (batch, 1)
    batch = 64
    input_dim = 16
    hidden_dims = [32, 32]

    key = jax.random.PRNGKey(0)
    key, kx = jax.random.split(key)
    x = jax.random.normal(kx, (batch, input_dim), dtype=jnp.float32)
    params = init_value_net_params(key, input_dim, hidden_dims)

    prepped = prepare_value_net_params(params)   # one-time prep; reuse across calls
    value = value_net_forward(x, prepped)
    jax.block_until_ready(value)

    # Reference in plain f32 JAX (same semantics as the PyTorch forward).
    h = x
    for (w, b) in params[:-1]:
        h = jnp.maximum(h @ w + b, 0.0)
    ref = h @ params[-1][0] + params[-1][1]

    assert value.shape == (batch, 1), value.shape
    # Hidden layers use bf16 MXU inputs with f32 accumulation (head is pure f32) ->
    # small relative error vs the f32 reference.
    assert jnp.allclose(value, ref, atol=5e-2, rtol=5e-2), (
        float(jnp.max(jnp.abs(value - ref))))

    print("KERNEL_OK")
</pallas_src>

<mosaic_0001>
module attributes {stable_mosaic.version = 11 : i64} {
  func.func @kernel(%arg0: i32, %arg1: memref<16x128xbf16, #tpu.memory_space<vmem>>, %arg2: memref<32x16xbf16, #tpu.memory_space<vmem>>, %arg3: memref<32x1xf32, #tpu.memory_space<vmem>>, %arg4: memref<32x32xbf16, #tpu.memory_space<vmem>>, %arg5: memref<32x1xf32, #tpu.memory_space<vmem>>, %arg6: memref<32x1xf32, #tpu.memory_space<vmem>>, %arg7: memref<1x1xf32, #tpu.memory_space<vmem>>, %arg8: memref<1x128xf32, #tpu.memory_space<vmem>>) attributes {dimension_semantics = [#tpu.dimension_semantics<parallel>], iteration_bounds = array<i64: 1>, scalar_prefetch = 0 : i64, scratch_operands = 0 : i64, tpu.core_type = #tpu.core_type<tc>, window_params = [{transform_indices = @transform_0, window_bounds = array<i64: 16, 128>}, {pipeline_mode = #tpu.pipeline_mode<synchronous>, transform_indices = @transform_1, window_bounds = array<i64: 32, 16>}, {pipeline_mode = #tpu.pipeline_mode<synchronous>, transform_indices = @transform_2, window_bounds = array<i64: 32, 1>}, {pipeline_mode = #tpu.pipeline_mode<synchronous>, transform_indices = @transform_3, window_bounds = array<i64: 32, 32>}, {pipeline_mode = #tpu.pipeline_mode<synchronous>, transform_indices = @transform_4, window_bounds = array<i64: 32, 1>}, {pipeline_mode = #tpu.pipeline_mode<synchronous>, transform_indices = @transform_5, window_bounds = array<i64: 32, 1>}, {pipeline_mode = #tpu.pipeline_mode<synchronous>, transform_indices = @transform_6, window_bounds = array<i64: 1, 1>}, {transform_indices = @transform_7, window_bounds = array<i64: 1, 128>}]} {
    %c0 = arith.constant 0 : index
    %c0_0 = arith.constant 0 : index
    %0 = vector.load %arg1[%c0, %c0_0] : memref<16x128xbf16, #tpu.memory_space<vmem>>, vector<16x128xbf16>
    %c0_1 = arith.constant 0 : index
    %c0_2 = arith.constant 0 : index
    %1 = vector.load %arg2[%c0_1, %c0_2] : memref<32x16xbf16, #tpu.memory_space<vmem>>, vector<32x16xbf16>
    %c0_3 = arith.constant 0 : index
    %c0_4 = arith.constant 0 : index
    %2 = vector.load %arg3[%c0_3, %c0_4] : memref<32x1xf32, #tpu.memory_space<vmem>>, vector<32x1xf32>
    %cst = arith.constant dense<0.000000e+00> : vector<32x128xf32>
    %3 = tpu.matmul %1, %0, %cst {dimension_numbers = #tpu.dot_dimension_numbers<[1], [0], [0], [1], [0, 0, 1, 1], [], []>} : vector<32x16xbf16>, vector<16x128xbf16>, vector<32x128xf32> -> vector<32x128xf32>
    %4 = vector.broadcast %2 : vector<32x1xf32> to vector<32x128xf32>
    %5 = arith.addf %3, %4 : vector<32x128xf32>
    %cst_5 = arith.constant 0.000000e+00 : f32
    %6 = vector.broadcast %cst_5 : f32 to vector<32x128xf32>
    %7 = arith.maximumf %5, %6 : vector<32x128xf32>
    %8 = arith.truncf %7 : vector<32x128xf32> to vector<32x128xbf16>
    %c0_6 = arith.constant 0 : index
    %c0_7 = arith.constant 0 : index
    %9 = vector.load %arg4[%c0_6, %c0_7] : memref<32x32xbf16, #tpu.memory_space<vmem>>, vector<32x32xbf16>
    %c0_8 = arith.constant 0 : index
    %c0_9 = arith.constant 0 : index
    %10 = vector.load %arg5[%c0_8, %c0_9] : memref<32x1xf32, #tpu.memory_space<vmem>>, vector<32x1xf32>
    %cst_10 = arith.constant dense<0.000000e+00> : vector<32x128xf32>
    %11 = tpu.matmul %9, %8, %cst_10 {dimension_numbers = #tpu.dot_dimension_numbers<[1], [0], [0], [1], [0, 0, 1, 1], [], []>} : vector<32x32xbf16>, vector<32x128xbf16>, vector<32x128xf32> -> vector<32x128xf32>
    %12 = vector.broadcast %10 : vector<32x1xf32> to vector<32x128xf32>
    %13 = arith.addf %11, %12 : vector<32x128xf32>
    %cst_11 = arith.constant 0.000000e+00 : f32
    %14 = vector.broadcast %cst_11 : f32 to vector<32x128xf32>
    %15 = arith.maximumf %13, %14 : vector<32x128xf32>
    %c0_12 = arith.constant 0 : index
    %c0_13 = arith.constant 0 : index
    %16 = vector.load %arg6[%c0_12, %c0_13] : memref<32x1xf32, #tpu.memory_space<vmem>>, vector<32x1xf32>
    %c0_14 = arith.constant 0 : index
    %c0_15 = arith.constant 0 : index
    %17 = vector.load %arg7[%c0_14, %c0_15] : memref<1x1xf32, #tpu.memory_space<vmem>>, vector<1x1xf32>
    %18 = vector.broadcast %16 : vector<32x1xf32> to vector<32x128xf32>
    %19 = arith.mulf %15, %18 : vector<32x128xf32>
    %cst_16 = arith.constant dense<0.000000e+00> : vector<128xf32>
    %20 = vector.multi_reduction <add>, %19, %cst_16 [0] : vector<32x128xf32> to vector<128xf32>
    %21 = vector.shape_cast %20 : vector<128xf32> to vector<1x128xf32>
    %22 = vector.broadcast %17 : vector<1x1xf32> to vector<1x128xf32>
    %23 = arith.addf %21, %22 : vector<1x128xf32>
    %c0_17 = arith.constant 0 : index
    %c0_18 = arith.constant 0 : index
    %24 = vector.load %arg8[%c0_17, %c0_18] : memref<1x128xf32, #tpu.memory_space<vmem>>, vector<1x128xf32>
    tpu.vector_store %arg8[%c0_17, %c0_18], %23 {strides = array<i32>} : memref<1x128xf32, #tpu.memory_space<vmem>>, vector<1x128xf32>,
    return
  }
  func.func @transform_0(%arg0: i32) -> (i32, i32) {
    %c0_i32 = arith.constant 0 : i32
    %c0_i32_0 = arith.constant 0 : i32
    return %c0_i32, %arg0 : i32, i32
  }
  func.func @transform_1(%arg0: i32) -> (i32, i32) {
    %c0_i32 = arith.constant 0 : i32
    %c0_i32_0 = arith.constant 0 : i32
    %c0_i32_1 = arith.constant 0 : i32
    return %c0_i32, %c0_i32_0 : i32, i32
  }
  func.func @transform_2(%arg0: i32) -> (i32, i32) {
    %c0_i32 = arith.constant 0 : i32
    %c0_i32_0 = arith.constant 0 : i32
    %c0_i32_1 = arith.constant 0 : i32
    return %c0_i32, %c0_i32_0 : i32, i32
  }
  func.func @transform_3(%arg0: i32) -> (i32, i32) {
    %c0_i32 = arith.constant 0 : i32
    %c0_i32_0 = arith.constant 0 : i32
    %c0_i32_1 = arith.constant 0 : i32
    return %c0_i32, %c0_i32_0 : i32, i32
  }
  func.func @transform_4(%arg0: i32) -> (i32, i32) {
    %c0_i32 = arith.constant 0 : i32
    %c0_i32_0 = arith.constant 0 : i32
    %c0_i32_1 = arith.constant 0 : i32
    return %c0_i32, %c0_i32_0 : i32, i32
  }
  func.func @transform_5(%arg0: i32) -> (i32, i32) {
    %c0_i32 = arith.constant 0 : i32
    %c0_i32_0 = arith.constant 0 : i32
    %c0_i32_1 = arith.constant 0 : i32
    return %c0_i32, %c0_i32_0 : i32, i32
  }
  func.func @transform_6(%arg0: i32) -> (i32, i32) {
    %c0_i32 = arith.constant 0 : i32
    %c0_i32_0 = arith.constant 0 : i32
    %c0_i32_1 = arith.constant 0 : i32
    return %c0_i32, %c0_i32_0 : i32, i32
  }
  func.func @transform_7(%arg0: i32) -> (i32, i32) {
    %c0_i32 = arith.constant 0 : i32
    %c0_i32_0 = arith.constant 0 : i32
    return %c0_i32, %arg0 : i32, i32
  }
}

</mosaic_0001>

<llo_original>
// kernel: value_net_forward.1
$region0: #{value_net_forward.1}
  #allocation0 [shape = 'u32[]', space=smem, size = 0x4, offset = 0x4, fixed_abs, tag = 'smem constant byte address 0x4 - core index']
  #allocation1 [shape = 'u32[144,128]{1,0:T(1,128)}', space=vmem, size = 0x12000, scoped, tag = 'internal scratch']
  #allocation2 [shape = 'f32[1,1]{1,0:T(1,128)S(1)}', space=vmem, size = 0x200, scoped, tag = 'scoped memory for value_net_forward.1']
  %s0 = inlined_call_operand.vmem [shape: bf16[16,128], index: 0, kind: input, shape index: {}]
  %s1 = inlined_call_operand.vmem [shape: bf16[32,16], index: 1, kind: input, shape index: {}]
  %s2 = inlined_call_operand.vmem [shape: f32[32,1], index: 2, kind: input, shape index: {}]
  %s3 = inlined_call_operand.vmem [shape: bf16[32,32], index: 3, kind: input, shape index: {}]
  %s4 = inlined_call_operand.vmem [shape: f32[32,1], index: 4, kind: input, shape index: {}]
  %s5 = inlined_call_operand.vmem [shape: f32[32,1], index: 5, kind: input, shape index: {}]
  %s6 = inlined_call_operand.<no memory space> [shape: f32[1,1], index: 6, kind: input, shape index: {}]
  %s7 = inlined_call_operand.vmem [shape: f32[1,128], index: 7, kind: output, shape index: {}]
  %s8 = sld [smem:[#allocation0]]
  $region38: #{value_net_forward.1} parent=0
    _
  %s10 = ssub.s32 1, %s8
  %s11 = scalar_select 0, %s10, %s8
  %v12 = vstv %s6
  %13 = vst [vmem:[#allocation2] sm:$0x1] %v12
  // Predicated region
  $region2: #{value_net_forward.1} parent=0 // pred_check
    _
  $region3: #{value_net_forward.1} parent=0 // pred_check_branch
    %15 = sbr.rel (0) target = $region5
  $region4: #{value_net_forward.1} parent=0 // pred_region
    _
  $region5: #{value_net_forward.1} parent=0 // pred_fallthru
    _
  // Predicated region
  $region6: #{value_net_forward.1} parent=0 // pred_check
    _
  $region7: #{value_net_forward.1} parent=0 // pred_check_branch
    %17 = sbr.rel (0) target = $region9
  $region8: #{value_net_forward.1} parent=0 // pred_region
    _
  $region9: #{value_net_forward.1} parent=0 // pred_fallthru
    _
  // Predicated region
  $region10: #{value_net_forward.1} parent=0 // pred_check
    _
  $region11: #{value_net_forward.1} parent=0 // pred_check_branch
    %19 = sbr.rel (0) target = $region13
  $region12: #{value_net_forward.1} parent=0 // pred_region
    _
  $region13: #{value_net_forward.1} parent=0 // pred_fallthru
    _
  // Predicated region
  $region14: #{value_net_forward.1} parent=0 // pred_check
    _
  $region15: #{value_net_forward.1} parent=0 // pred_check_branch
    %21 = sbr.rel (0) target = $region17
  $region16: #{value_net_forward.1} parent=0 // pred_region
    _
  $region17: #{value_net_forward.1} parent=0 // pred_fallthru
    _
  // Predicated region
  $region18: #{value_net_forward.1} parent=0 // pred_check
    _
  $region19: #{value_net_forward.1} parent=0 // pred_check_branch
    %23 = sbr.rel (0) target = $region21
  $region20: #{value_net_forward.1} parent=0 // pred_region
    _
  $region21: #{value_net_forward.1} parent=0 // pred_fallthru
    _
  // Predicated region
  $region22: #{value_net_forward.1} parent=0 // pred_check
    _
  $region23: #{value_net_forward.1} parent=0 // pred_check_branch
    %25 = sbr.rel (0) target = $region25
  $region24: #{value_net_forward.1} parent=0 // pred_region
    _
  $region25: #{value_net_forward.1} parent=0 // pred_fallthru
    _
  // Predicated region
  $region26: #{value_net_forward.1} parent=0 // pred_check
    _
  $region27: #{value_net_forward.1} parent=0 // pred_check_branch
    %27 = sbr.rel (0) target = $region29
  $region28: #{value_net_forward.1} parent=0 // pred_region
    _
  $region29: #{value_net_forward.1} parent=0 // pred_fallthru
    _
  %v29 = vld [vmem:[%s0] sm:$0xf]
  %v30 = vld [vmem:[%s0 + $0x4] sm:$0xf]
  %v31 = vld [vmem:[%s1] sm:$0xf]
  %v32 = vld [vmem:[%s1 + $0x4] sm:$0xf]
  %v33 = vld [vmem:[%s1 + $0x8] sm:$0xf]
  %v34 = vld [vmem:[%s1 + $0xc] sm:$0xf]
  %v35 = vld [vmem:[%s2] sm:$0xff]
  %v36 = vld [vmem:[%s2 + $0x8] sm:$0xff]
  %v37 = vld [vmem:[%s2 + $0x10] sm:$0xff]
  %v38 = vld [vmem:[%s2 + $0x18] sm:$0xff]
  %40 = vset.pattern.permute.xlu0 0
  %41 = vperm.xlu0 %40, %v35
  %v42 = vpop.permute.xlu0 %41
  %45 = vset.pattern.permute.xlu0 0
  %46 = vperm.xlu0 %45, %v36
  %v47 = vpop.permute.xlu0 %46
  %50 = vset.pattern.permute.xlu0 0
  %51 = vperm.xlu0 %50, %v37
  %v52 = vpop.permute.xlu0 %51
  %55 = vset.pattern.permute.xlu0 0
  %56 = vperm.xlu0 %55, %v38
  %v57 = vpop.permute.xlu0 %56
  %v63 = vunpack.c.l.b16 %v31
  %v64 = vunpack.c.l.b16 %v32
  %v65 = vunpack.c.l.b16 %v33
  %v66 = vunpack.c.l.b16 %v34
  %v67 = vpack.c.b16 %v64, %v63
  %v68 = vpack.c.b16 %v66, %v65
  %v71 = vunpack.c.l.b16 %v29
  %v72 = vunpack.c.l.b16 %v30
  %v73 = vpack.c.b16 %v72, %v71
  %vm75 = vcmask 130048
  %v77 = vsel %vm75, %v67, 0
  %v80 = vsel %vm75, %v68, 0
  %82 = vmatprep.subr.bf16.mxu0 0
  %83 = vmatpush1.bf16.msra.mxu0 %v73
  %84 = vmatprep.subr.bf16.mxu0 0
  %85 = vmatpush1.bf16.msra.mxu0 0
  %86 = vmatprep.subr.bf16.mxu0 0
  %87 = vmatpush1.bf16.msra.mxu0 0
  %88 = vmatprep.subr.bf16.mxu0 0
  %89 = vmatpush1.bf16.msra.mxu0 0
  %90 = vmatprep.subr.bf16.mxu0 0
  %91 = vmatpush1.bf16.msra.mxu0 0
  %92 = vmatprep.subr.bf16.mxu0 0
  %93 = vmatpush1.bf16.msra.mxu0 0
  %94 = vmatprep.subr.bf16.mxu0 0
  %95 = vmatpush1.bf16.msra.mxu0 0
  %96 = vmatprep.subr.bf16.mxu0 0
  %97 = vmatpush1.bf16.msra.mxu0 0
  %98 = vmatprep.subr.bf16.mxu0 0
  %99 = vmatpush1.bf16.msra.mxu0 0
  %100 = vmatprep.subr.bf16.mxu0 0
  %101 = vmatpush1.bf16.msra.mxu0 0
  %102 = vmatprep.subr.bf16.mxu0 0
  %103 = vmatpush1.bf16.msra.mxu0 0
  %104 = vmatprep.subr.bf16.mxu0 0
  %105 = vmatpush1.bf16.msra.mxu0 0
  %106 = vmatprep.subr.bf16.mxu0 0
  %107 = vmatpush1.bf16.msra.mxu0 0
  %108 = vmatprep.subr.bf16.mxu0 0
  %109 = vmatpush1.bf16.msra.mxu0 0
  %110 = vmatprep.subr.bf16.mxu0 0
  %111 = vmatpush1.bf16.msra.mxu0 0
  %112 = vmatprep.subr.bf16.mxu0 0
  %113 = vmatpush1.bf16.msra.mxu0 0
  %114 = vmatprep.mubr.bf16.mxu0 0
  %115 = vmatmul.mubr.bf16.gmra.mrb[0].mxu0 %v77
  %v116 = vpop.f32.mrb[0].mxu0
  %v117 = vadd.f32 %v42, %v116
  %v118 = vpop.f32.mrb[0].mxu0
  %v119 = vpop.f32.mrb[0].mxu0
  %v120 = vadd.f32 %v47, %v119
  %v121 = vpop.f32.mrb[0].mxu0
  %122 = vmatprep.mubr.bf16.mxu0 0
  %123 = vmatmul.mubr.bf16.gmra.mrb[0].mxu0 %v80
  %v124 = vpop.f32.mrb[0].mxu0
  %v125 = vadd.f32 %v52, %v124
  %v126 = vpop.f32.mrb[0].mxu0
  %v127 = vpop.f32.mrb[0].mxu0
  %v128 = vadd.f32 %v57, %v127
  %v129 = vpop.f32.mrb[0].mxu0
  %130 = vdwg.mxu0
  %v131 = vmax.f32 %v117, 0.0
  %v132 = vmax.f32 %v120, 0.0
  %v133 = vmax.f32 %v125, 0.0
  %v134 = vmax.f32 %v128, 0.0
  %v135 = vpack.c.bf16 %v132, %v131
  %v136 = vpack.c.bf16 %v134, %v133
  %v137 = vld [vmem:[%s3] sm:$0xf]
  %v138 = vld [vmem:[%s3 + $0x4] sm:$0xf]
  %v139 = vld [vmem:[%s3 + $0x8] sm:$0xf]
  %v140 = vld [vmem:[%s3 + $0xc] sm:$0xf]
  %v141 = vld [vmem:[%s4] sm:$0xff]
  %v142 = vld [vmem:[%s4 + $0x8] sm:$0xff]
  %v143 = vld [vmem:[%s4 + $0x10] sm:$0xff]
  %v144 = vld [vmem:[%s4 + $0x18] sm:$0xff]
  %146 = vset.pattern.permute.xlu0 0
  %147 = vperm.xlu0 %146, %v141
  %v148 = vpop.permute.xlu0 %147
  %151 = vset.pattern.permute.xlu0 0
  %152 = vperm.xlu0 %151, %v142
  %v153 = vpop.permute.xlu0 %152
  %156 = vset.pattern.permute.xlu0 0
  %157 = vperm.xlu0 %156, %v143
  %v158 = vpop.permute.xlu0 %157
  %161 = vset.pattern.permute.xlu0 0
  %162 = vperm.xlu0 %161, %v144
  %v163 = vpop.permute.xlu0 %162
  %v169 = vunpack.c.l.b16 %v137
  %v170 = vunpack.c.l.b16 %v138
  %v171 = vunpack.c.l.b16 %v139
  %v172 = vunpack.c.l.b16 %v140
  %v173 = vpack.c.b16 %v170, %v169
  %v174 = vpack.c.b16 %v172, %v171
  %vm175 = vcmask 261120
  %v177 = vsel %vm175, %v173, 0
  %v180 = vsel %vm175, %v174, 0
  %182 = vmatprep.subr.bf16.mxu0 0
  %183 = vmatpush1.bf16.msra.mxu0 %v135
  %184 = vmatprep.subr.bf16.mxu0 0
  %185 = vmatpush1.bf16.msra.mxu0 %v136
  %186 = vmatprep.subr.bf16.mxu0 0
  %187 = vmatpush1.bf16.msra.mxu0 0
  %188 = vmatprep.subr.bf16.mxu0 0
  %189 = vmatpush1.bf16.msra.mxu0 0
  %190 = vmatprep.subr.bf16.mxu0 0
  %191 = vmatpush1.bf16.msra.mxu0 0
  %192 = vmatprep.subr.bf16.mxu0 0
  %193 = vmatpush1.bf16.msra.mxu0 0
  %194 = vmatprep.subr.bf16.mxu0 0
  %195 = vmatpush1.bf16.msra.mxu0 0
  %196 = vmatprep.subr.bf16.mxu0 0
  %197 = vmatpush1.bf16.msra.mxu0 0
  %198 = vmatprep.subr.bf16.mxu0 0
  %199 = vmatpush1.bf16.msra.mxu0 0
  %200 = vmatprep.subr.bf16.mxu0 0
  %201 = vmatpush1.bf16.msra.mxu0 0
  %202 = vmatprep.subr.bf16.mxu0 0
  %203 = vmatpush1.bf16.msra.mxu0 0
  %204 = vmatprep.subr.bf16.mxu0 0
  %205 = vmatpush1.bf16.msra.mxu0 0
  %206 = vmatprep.subr.bf16.mxu0 0
  %207 = vmatpush1.bf16.msra.mxu0 0
  %208 = vmatprep.subr.bf16.mxu0 0
  %209 = vmatpush1.bf16.msra.mxu0 0
  %210 = vmatprep.subr.bf16.mxu0 0
  %211 = vmatpush1.bf16.msra.mxu0 0
  %212 = vmatprep.subr.bf16.mxu0 0
  %213 = vmatpush1.bf16.msra.mxu0 0
  %214 = vmatprep.mubr.bf16.mxu0 0
  %215 = vmatmul.mubr.bf16.gmra.mrb[0].mxu0 %v177
  %v216 = vpop.f32.mrb[0].mxu0
  %v217 = vadd.f32 %v148, %v216
  %v218 = vpop.f32.mrb[0].mxu0
  %v219 = vpop.f32.mrb[0].mxu0
  %v220 = vadd.f32 %v153, %v219
  %v221 = vpop.f32.mrb[0].mxu0
  %222 = vmatprep.mubr.bf16.mxu0 0
  %223 = vmatmul.mubr.bf16.gmra.mrb[0].mxu0 %v180
  %v224 = vpop.f32.mrb[0].mxu0
  %v225 = vadd.f32 %v158, %v224
  %v226 = vpop.f32.mrb[0].mxu0
  %v227 = vpop.f32.mrb[0].mxu0
  %v228 = vadd.f32 %v163, %v227
  %v229 = vpop.f32.mrb[0].mxu0
  %230 = vdwg.mxu0
  %v231 = vmax.f32 %v217, 0.0
  %v232 = vmax.f32 %v220, 0.0
  %v233 = vmax.f32 %v225, 0.0
  %v234 = vmax.f32 %v228, 0.0
  %v235 = vld [vmem:[%s5] sm:$0xff]
  %v236 = vld [vmem:[%s5 + $0x8] sm:$0xff]
  %v237 = vld [vmem:[%s5 + $0x10] sm:$0xff]
  %v238 = vld [vmem:[%s5 + $0x18] sm:$0xff]
  %v239 = vld [vmem:[#allocation2] sm:$0x1]
  %241 = vset.pattern.permute.xlu0 0
  %242 = vperm.xlu0 %241, %v235
  %v243 = vpop.permute.xlu0 %242
  %246 = vset.pattern.permute.xlu0 0
  %247 = vperm.xlu0 %246, %v236
  %v248 = vpop.permute.xlu0 %247
  %251 = vset.pattern.permute.xlu0 0
  %252 = vperm.xlu0 %251, %v237
  %v253 = vpop.permute.xlu0 %252
  %256 = vset.pattern.permute.xlu0 0
  %257 = vperm.xlu0 %256, %v238
  %v258 = vpop.permute.xlu0 %257
  %v260 = vmul.f32 %v231, %v243
  %v261 = vmul.f32 %v232, %v248
  %v262 = vmul.f32 %v233, %v253
  %v263 = vmul.f32 %v234, %v258
  %v264 = vadd.f32 %v260, %v261
  %v265 = vadd.f32 %v264, %v262
  %v266 = vadd.f32 %v265, %v263
  %v267 = vrot.slane %v266, 4
  %v268 = vadd.f32 %v266, %v267
  %v269 = vrot.slane %v268, 2
  %v270 = vadd.f32 %v268, %v269
  %v271 = vrot.slane %v270, 1
  %v272 = vadd.f32 %v270, %v271
  %274 = vset.pattern.permute.xlu0 0
  %275 = vperm.xlu0 %274, %v239
  %v276 = vpop.permute.xlu0 %275
  %v278 = vlaneseq
  %v279 = vshrl.u32 %v278, 7
  %v280 = vsub.s32 0, %v279
  %v281 = vrot.slane %v276, %v280
  %v282 = vadd.f32 %v272, %v281
  %283 = vst [vmem:[%s7] sm:$0x1] %v282
  // Predicated region
  $region30: #{value_net_forward.1} parent=0 // pred_check
    _
  $region31: #{value_net_forward.1} parent=0 // pred_check_branch
    %285 = sbr.rel (0) target = $region33
  $region32: #{value_net_forward.1} parent=0 // pred_region
    _
  $region33: #{value_net_forward.1} parent=0 // pred_fallthru
    _
  // Predicated region
  $region34: #{value_net_forward.1} parent=0 // pred_check
    _
  $region35: #{value_net_forward.1} parent=0 // pred_check_branch
    %287 = sbr.rel (0) target = $region37
  $region36: #{value_net_forward.1} parent=0 // pred_region
    _
  $region37: #{value_net_forward.1} parent=0 // pred_fallthru
    _

</llo_original>
